<compile_context>
chip_gen: v7x
topology: tpu7x:2x2x1
jax: 0.10.0
libtpu: 0.0.40
codegen_flags: <defaults>
</compile_context>

<pallas_src>
import jax
import jax.numpy as jnp
from jax.experimental import pallas as pl
from jax.experimental.pallas import tpu as pltpu


# ---------------------------------------------------------------------------
# Pallas kernel: per-lane DIoU + masked streaming reduction
# ---------------------------------------------------------------------------
def _diou_kernel(pred_ref, gt_ref, out_ref, acc_loss_ref, acc_cnt_ref):
    j = pl.program_id(0)

    @pl.when(j == 0)
    def _():
        acc_loss_ref[...] = jnp.zeros_like(acc_loss_ref)
        acc_cnt_ref[...] = jnp.zeros_like(acc_cnt_ref)

    # (8, tn) slabs; rows 0..5 = x, y, z, dx, dy, dz ; pred row 6 = mask.
    p = pred_ref[...].astype(jnp.float32)
    g = gt_ref[...].astype(jnp.float32)

    px, py, pz = p[0:1, :], p[1:2, :], p[2:3, :]
    pdx, pdy, pdz = p[3:4, :], p[4:5, :], p[5:6, :]
    m = p[6:7, :]
    gx, gy, gz = g[0:1, :], g[1:2, :], g[2:3, :]
    gdx, gdy, gdz = g[3:4, :], g[4:5, :], g[5:6, :]

    p_max_x, p_min_x = px + 0.5 * pdx, px - 0.5 * pdx
    p_max_y, p_min_y = py + 0.5 * pdy, py - 0.5 * pdy
    p_max_z, p_min_z = pz + 0.5 * pdz, pz - 0.5 * pdz
    g_max_x, g_min_x = gx + 0.5 * gdx, gx - 0.5 * gdx
    g_max_y, g_min_y = gy + 0.5 * gdy, gy - 0.5 * gdy
    g_max_z, g_min_z = gz + 0.5 * gdz, gz - 0.5 * gdz

    inter_w = jnp.maximum(jnp.minimum(p_max_x, g_max_x) - jnp.maximum(p_min_x, g_min_x), 0.0)
    inter_l = jnp.maximum(jnp.minimum(p_max_y, g_max_y) - jnp.maximum(p_min_y, g_min_y), 0.0)
    inter_h = jnp.maximum(jnp.minimum(p_max_z, g_max_z) - jnp.maximum(p_min_z, g_min_z), 0.0)

    vol_pred = pdx * pdy * pdz
    vol_gt = gdx * gdy * gdz
    vol_inter = inter_w * inter_l * inter_h
    vol_union = vol_gt + vol_pred - vol_inter

    inter_diag = (gx - px) ** 2 + (gy - py) ** 2 + (gz - pz) ** 2

    outer_w = jnp.maximum(jnp.maximum(p_max_x, g_max_x) - jnp.minimum(p_min_x, g_min_x), 0.0)
    outer_l = jnp.maximum(jnp.maximum(p_max_y, g_max_y) - jnp.minimum(p_min_y, g_min_y), 0.0)
    outer_h = jnp.maximum(jnp.maximum(p_max_z, g_max_z) - jnp.minimum(p_min_z, g_min_z), 0.0)
    outer_diag = outer_w ** 2 + outer_l ** 2 + outer_h ** 2

    dious = vol_inter / vol_union - inter_diag / outer_diag
    dious = jnp.clip(dious, -1.0, 1.0)

    # where-select (not a mask multiply) so NaNs from zero-padded lanes never leak.
    valid = m > 0.0
    acc_loss_ref[...] += jnp.where(valid, 1.0 - dious, 0.0)
    acc_cnt_ref[...] += jnp.where(valid, 1.0, 0.0)

    # Cross-lane reductions only once, in the epilogue; pack both scalars into a
    # single lane-dense (1, 128) output block (lane 0 = loss sum, lane 1 = count).
    @pl.when(j == pl.num_programs(0) - 1)
    def _():
        loss_sum = jnp.sum(acc_loss_ref[...])
        cnt_sum = jnp.sum(acc_cnt_ref[...])
        lane = jax.lax.broadcasted_iota(jnp.int32, (1, 128), 1)
        out_ref[...] = jnp.where(lane == 0, loss_sum,
                                 jnp.where(lane == 1, cnt_sum, 0.0))


# ---------------------------------------------------------------------------
# Wrapper
# ---------------------------------------------------------------------------
def _gather_sparse_preds(box_pred, ind, batch_index, batch_size):
    """pred[b, j] = box_pred[batch_index == b][ind[b, j]]  (PyTorch semantics)."""
    # Stable sort groups rows by batch while keeping original within-batch order,
    # exactly like boolean-mask selection in the PyTorch code.
    order = jnp.argsort(batch_index, stable=True)
    counts = jnp.sum(batch_index[None, :] == jnp.arange(batch_size)[:, None], axis=1)
    offsets = jnp.concatenate(
        [jnp.zeros((1,), jnp.int32), jnp.cumsum(counts)[:-1].astype(jnp.int32)])
    flat_idx = order[offsets[:, None] + ind]               # (batch, max_obj)
    return box_pred[flat_idx]                              # (batch, max_obj, dim)


def iou_reg_loss_sparse(box_pred, mask, ind, box_gt, batch_index, *, lane_tile=2048):
    """IouRegLossSparse.forward: DIoU loss over masked, gathered sparse boxes."""
    batch_size, max_obj = mask.shape
    M = batch_size * max_obj

    # TODO(synk): the ragged per-batch gather is tiny and stays in plain JAX;
    # only the DIoU math + reduction runs inside the Pallas kernel.
    pred = _gather_sparse_preds(box_pred, ind, batch_index, batch_size)
    pred6 = pred.reshape(M, -1)[:, :6].astype(jnp.float32).T            # (6, M)
    gt6 = box_gt.reshape(M, -1)[:, :6].astype(jnp.float32).T            # (6, M)
    maskf = (mask.reshape(1, M) > 0).astype(jnp.float32)                # (1, M)

    # Structure-of-arrays slabs: fields on sublanes, one box pair per lane.
    pred_soa = jnp.concatenate(
        [pred6, maskf, jnp.zeros((1, M), jnp.float32)], axis=0)         # (8, M)
    gt_soa = jnp.concatenate([gt6, jnp.zeros((2, M), jnp.float32)], axis=0)

    # Big lane tiles (mem-bound streaming reduce). 2 inputs x 2 buffers x 8 x tn x 4B
    # = 128 KiB at tn=2048 — far under the scoped-VMEM limit of v5e/v6e/v7x.
    m128 = max(128, -(-M // 128) * 128)
    tn = min(lane_tile, m128)
    m_pad = -(-M // tn) * tn
    if m_pad != M:
        pad = m_pad - M
        pred_soa = jnp.pad(pred_soa, ((0, 0), (0, pad)))                # padded lanes: mask=0
        gt_soa = jnp.pad(gt_soa, ((0, 0), (0, pad)))

    out = pl.pallas_call(
        _diou_kernel,
        out_shape=jax.ShapeDtypeStruct((1, 128), jnp.float32),
        grid_spec=pltpu.PrefetchScalarGridSpec(
            num_scalar_prefetch=0,
            grid=(m_pad // tn,),
            in_specs=[
                pl.BlockSpec((8, tn), lambda j: (0, j)),
                pl.BlockSpec((8, tn), lambda j: (0, j)),
            ],
            out_specs=pl.BlockSpec((1, 128), lambda j: (0, 0)),
            scratch_shapes=[
                pltpu.VMEM((1, tn), jnp.float32),   # per-lane loss partials
                pltpu.VMEM((1, tn), jnp.float32),   # per-lane valid-count partials
            ],
        ),
        compiler_params=pltpu.CompilerParams(
            dimension_semantics=("arbitrary",),
        ),
    )(pred_soa, gt_soa)

    loss_sum = out[0, 0]
    num_valid = out[0, 1]
    # Matches: `if mask.sum() == 0: return 0` and `loss / (mask.sum() + 0.0001)`.
    return jnp.where(num_valid == 0.0, 0.0, loss_sum / (num_valid + 1e-4))


# ---------------------------------------------------------------------------
# Pure-JAX reference (direct transcription of the PyTorch module)
# ---------------------------------------------------------------------------
def _bbox3d_diou_ref(pred_boxes, gt_boxes):
    qmin = pred_boxes[:, :2] - 0.5 * pred_boxes[:, 3:5]
    qmax = pred_boxes[:, :2] + 0.5 * pred_boxes[:, 3:5]
    gmin = gt_boxes[:, :2] - 0.5 * gt_boxes[:, 3:5]
    gmax = gt_boxes[:, :2] + 0.5 * gt_boxes[:, 3:5]

    inter_max_xy = jnp.minimum(qmax, gmax)
    inter_min_xy = jnp.maximum(qmin, gmin)
    out_max_xy = jnp.maximum(qmax, gmax)
    out_min_xy = jnp.minimum(qmin, gmin)

    vol_pred = pred_boxes[:, 3] * pred_boxes[:, 4] * pred_boxes[:, 5]
    vol_gt = gt_boxes[:, 3] * gt_boxes[:, 4] * gt_boxes[:, 5]

    inter_h = (jnp.minimum(pred_boxes[:, 2] + 0.5 * pred_boxes[:, 5],
                           gt_boxes[:, 2] + 0.5 * gt_boxes[:, 5]) -
               jnp.maximum(pred_boxes[:, 2] - 0.5 * pred_boxes[:, 5],
                           gt_boxes[:, 2] - 0.5 * gt_boxes[:, 5]))
    inter_h = jnp.maximum(inter_h, 0.0)
    inter = jnp.maximum(inter_max_xy - inter_min_xy, 0.0)
    vol_inter = inter[:, 0] * inter[:, 1] * inter_h
    vol_union = vol_gt + vol_pred - vol_inter

    inter_diag = jnp.sum((gt_boxes[:, 0:3] - pred_boxes[:, 0:3]) ** 2, axis=-1)
    outer_h = (jnp.maximum(gt_boxes[:, 2] + 0.5 * gt_boxes[:, 5],
                           pred_boxes[:, 2] + 0.5 * pred_boxes[:, 5]) -
               jnp.minimum(gt_boxes[:, 2] - 0.5 * gt_boxes[:, 5],
                           pred_boxes[:, 2] - 0.5 * pred_boxes[:, 5]))
    outer_h = jnp.maximum(outer_h, 0.0)
    outer = jnp.maximum(out_max_xy - out_min_xy, 0.0)
    outer_diag = outer[:, 0] ** 2 + outer[:, 1] ** 2 + outer_h ** 2

    dious = vol_inter / vol_union - inter_diag / outer_diag
    return jnp.clip(dious, -1.0, 1.0)


def _reference(box_pred, mask, ind, box_gt, batch_index):
    batch_size, max_obj = mask.shape
    pred = _gather_sparse_preds(box_pred, ind, batch_index, batch_size)
    pred = pred.reshape(batch_size * max_obj, -1).astype(jnp.float32)
    gt = box_gt.reshape(batch_size * max_obj, -1).astype(jnp.float32)
    dious = _bbox3d_diou_ref(pred, gt)
    m = mask.reshape(-1) > 0
    loss = jnp.sum(jnp.where(m, 1.0 - dious, 0.0))
    n = jnp.sum(m.astype(jnp.float32))
    return jnp.where(n == 0.0, 0.0, loss / (n + 1e-4))


if __name__ == "__main__":
    key = jax.random.PRNGKey(0)
    ks = jax.random.split(key, 8)

    batch_size = 2
    max_obj = 40
    n_per_batch = (120, 80)          # sparse voxel counts per sample
    n_total = sum(n_per_batch)

    batch_index = jnp.concatenate([
        jnp.full((n_per_batch[0],), 0, jnp.int32),
        jnp.full((n_per_batch[1],), 1, jnp.int32),
    ])

    # box_pred: (N_total, 7) = x, y, z, dx, dy, dz, heading
    centers = jax.random.uniform(ks[0], (n_total, 3), jnp.float32, -10.0, 10.0)
    sizes = jax.random.uniform(ks[1], (n_total, 3), jnp.float32, 1.0, 4.0)
    heading = jax.random.uniform(ks[2], (n_total, 1), jnp.float32, -3.14, 3.14)
    box_pred = jnp.concatenate([centers, sizes, heading], axis=1)

    # ind: valid indices into each batch's subset of sparse predictions
    ind = jnp.stack([
        jax.random.randint(ks[3], (max_obj,), 0, n_per_batch[0]),
        jax.random.randint(ks[4], (max_obj,), 0, n_per_batch[1]),
    ]).astype(jnp.int32)

    mask = (jax.random.uniform(ks[5], (batch_size, max_obj)) > 0.4).astype(jnp.float32)

    # Slot-aligned GT boxes: jittered copies of the gathered preds so IoUs vary.
    gathered = _gather_sparse_preds(box_pred, ind, batch_index, batch_size)
    c_noise = jax.random.uniform(ks[6], (batch_size, max_obj, 3), jnp.float32, -1.5, 1.5)
    s_noise = jax.random.uniform(ks[7], (batch_size, max_obj, 3), jnp.float32, 0.7, 1.3)
    box_gt = jnp.concatenate([
        gathered[..., 0:3] + c_noise,
        gathered[..., 3:6] * s_noise,
        gathered[..., 6:7],
    ], axis=-1)

    loss = iou_reg_loss_sparse(box_pred, mask, ind, box_gt, batch_index)
    jax.block_until_ready(loss)

    ref = _reference(box_pred, mask, ind, box_gt, batch_index)
    assert jnp.allclose(loss, ref, rtol=1e-5, atol=1e-5), (loss, ref)

    print("KERNEL_OK")
</pallas_src>

<mosaic_0001>
module attributes {stable_mosaic.version = 11 : i64} {
  func.func @_diou_kernel(%arg0: i32, %arg1: memref<8x128xf32, #tpu.memory_space<vmem>>, %arg2: memref<8x128xf32, #tpu.memory_space<vmem>>, %arg3: memref<1x128xf32, #tpu.memory_space<vmem>>, %arg4: memref<1x128xf32, #tpu.memory_space<vmem>>, %arg5: memref<1x128xf32, #tpu.memory_space<vmem>>) attributes {dimension_semantics = [#tpu.dimension_semantics<arbitrary>], iteration_bounds = array<i64: 1>, scalar_prefetch = 0 : i64, scratch_operands = 2 : i64, tpu.core_type = #tpu.core_type<tc>, window_params = [{transform_indices = @transform_0, window_bounds = array<i64: 8, 128>}, {transform_indices = @transform_1, window_bounds = array<i64: 8, 128>}, {pipeline_mode = #tpu.pipeline_mode<synchronous>, transform_indices = @transform_2, window_bounds = array<i64: 1, 128>}]} {
    %c0_i32 = arith.constant 0 : i32
    %0 = arith.cmpi eq, %arg0, %c0_i32 : i32
    %1 = arith.extui %0 : i1 to i32
    %c0_i32_0 = arith.constant 0 : i32
    %2 = arith.cmpi ne, %1, %c0_i32_0 : i32
    scf.if %2 {
      %cst_38 = arith.constant 0.000000e+00 : f32
      %130 = vector.broadcast %cst_38 : f32 to vector<1x128xf32>
      %c0_39 = arith.constant 0 : index
      %c0_40 = arith.constant 0 : index
      %131 = vector.load %arg4[%c0_39, %c0_40] : memref<1x128xf32, #tpu.memory_space<vmem>>, vector<1x128xf32>
      tpu.vector_store %arg4[%c0_39, %c0_40], %130 {strides = array<i32>} : memref<1x128xf32, #tpu.memory_space<vmem>>, vector<1x128xf32>,
      %cst_41 = arith.constant 0.000000e+00 : f32
      %132 = vector.broadcast %cst_41 : f32 to vector<1x128xf32>
      %c0_42 = arith.constant 0 : index
      %c0_43 = arith.constant 0 : index
      %133 = vector.load %arg5[%c0_42, %c0_43] : memref<1x128xf32, #tpu.memory_space<vmem>>, vector<1x128xf32>
      tpu.vector_store %arg5[%c0_42, %c0_43], %132 {strides = array<i32>} : memref<1x128xf32, #tpu.memory_space<vmem>>, vector<1x128xf32>,
    } else {
    }
    %c0 = arith.constant 0 : index
    %c0_1 = arith.constant 0 : index
    %3 = vector.load %arg1[%c0, %c0_1] : memref<8x128xf32, #tpu.memory_space<vmem>>, vector<8x128xf32>
    %c0_2 = arith.constant 0 : index
    %c0_3 = arith.constant 0 : index
    %4 = vector.load %arg2[%c0_2, %c0_3] : memref<8x128xf32, #tpu.memory_space<vmem>>, vector<8x128xf32>
    %5 = vector.extract_strided_slice %3 {offsets = [0, 0], sizes = [1, 128], strides = [1, 1]} : vector<8x128xf32> to vector<1x128xf32>
    %6 = vector.extract_strided_slice %3 {offsets = [1, 0], sizes = [1, 128], strides = [1, 1]} : vector<8x128xf32> to vector<1x128xf32>
    %7 = vector.extract_strided_slice %3 {offsets = [2, 0], sizes = [1, 128], strides = [1, 1]} : vector<8x128xf32> to vector<1x128xf32>
    %8 = vector.extract_strided_slice %3 {offsets = [3, 0], sizes = [1, 128], strides = [1, 1]} : vector<8x128xf32> to vector<1x128xf32>
    %9 = vector.extract_strided_slice %3 {offsets = [4, 0], sizes = [1, 128], strides = [1, 1]} : vector<8x128xf32> to vector<1x128xf32>
    %10 = vector.extract_strided_slice %3 {offsets = [5, 0], sizes = [1, 128], strides = [1, 1]} : vector<8x128xf32> to vector<1x128xf32>
    %11 = vector.extract_strided_slice %3 {offsets = [6, 0], sizes = [1, 128], strides = [1, 1]} : vector<8x128xf32> to vector<1x128xf32>
    %12 = vector.extract_strided_slice %4 {offsets = [0, 0], sizes = [1, 128], strides = [1, 1]} : vector<8x128xf32> to vector<1x128xf32>
    %13 = vector.extract_strided_slice %4 {offsets = [1, 0], sizes = [1, 128], strides = [1, 1]} : vector<8x128xf32> to vector<1x128xf32>
    %14 = vector.extract_strided_slice %4 {offsets = [2, 0], sizes = [1, 128], strides = [1, 1]} : vector<8x128xf32> to vector<1x128xf32>
    %15 = vector.extract_strided_slice %4 {offsets = [3, 0], sizes = [1, 128], strides = [1, 1]} : vector<8x128xf32> to vector<1x128xf32>
    %16 = vector.extract_strided_slice %4 {offsets = [4, 0], sizes = [1, 128], strides = [1, 1]} : vector<8x128xf32> to vector<1x128xf32>
    %17 = vector.extract_strided_slice %4 {offsets = [5, 0], sizes = [1, 128], strides = [1, 1]} : vector<8x128xf32> to vector<1x128xf32>
    %cst = arith.constant 5.000000e-01 : f32
    %18 = vector.broadcast %cst : f32 to vector<1x128xf32>
    %19 = arith.mulf %18, %8 : vector<1x128xf32>
    %20 = arith.addf %5, %19 : vector<1x128xf32>
    %cst_4 = arith.constant 5.000000e-01 : f32
    %21 = vector.broadcast %cst_4 : f32 to vector<1x128xf32>
    %22 = arith.mulf %21, %8 : vector<1x128xf32>
    %23 = arith.subf %5, %22 : vector<1x128xf32>
    %cst_5 = arith.constant 5.000000e-01 : f32
    %24 = vector.broadcast %cst_5 : f32 to vector<1x128xf32>
    %25 = arith.mulf %24, %9 : vector<1x128xf32>
    %26 = arith.addf %6, %25 : vector<1x128xf32>
    %cst_6 = arith.constant 5.000000e-01 : f32
    %27 = vector.broadcast %cst_6 : f32 to vector<1x128xf32>
    %28 = arith.mulf %27, %9 : vector<1x128xf32>
    %29 = arith.subf %6, %28 : vector<1x128xf32>
    %cst_7 = arith.constant 5.000000e-01 : f32
    %30 = vector.broadcast %cst_7 : f32 to vector<1x128xf32>
    %31 = arith.mulf %30, %10 : vector<1x128xf32>
    %32 = arith.addf %7, %31 : vector<1x128xf32>
    %cst_8 = arith.constant 5.000000e-01 : f32
    %33 = vector.broadcast %cst_8 : f32 to vector<1x128xf32>
    %34 = arith.mulf %33, %10 : vector<1x128xf32>
    %35 = arith.subf %7, %34 : vector<1x128xf32>
    %cst_9 = arith.constant 5.000000e-01 : f32
    %36 = vector.broadcast %cst_9 : f32 to vector<1x128xf32>
    %37 = arith.mulf %36, %15 : vector<1x128xf32>
    %38 = arith.addf %12, %37 : vector<1x128xf32>
    %cst_10 = arith.constant 5.000000e-01 : f32
    %39 = vector.broadcast %cst_10 : f32 to vector<1x128xf32>
    %40 = arith.mulf %39, %15 : vector<1x128xf32>
    %41 = arith.subf %12, %40 : vector<1x128xf32>
    %cst_11 = arith.constant 5.000000e-01 : f32
    %42 = vector.broadcast %cst_11 : f32 to vector<1x128xf32>
    %43 = arith.mulf %42, %16 : vector<1x128xf32>
    %44 = arith.addf %13, %43 : vector<1x128xf32>
    %cst_12 = arith.constant 5.000000e-01 : f32
    %45 = vector.broadcast %cst_12 : f32 to vector<1x128xf32>
    %46 = arith.mulf %45, %16 : vector<1x128xf32>
    %47 = arith.subf %13, %46 : vector<1x128xf32>
    %cst_13 = arith.constant 5.000000e-01 : f32
    %48 = vector.broadcast %cst_13 : f32 to vector<1x128xf32>
    %49 = arith.mulf %48, %17 : vector<1x128xf32>
    %50 = arith.addf %14, %49 : vector<1x128xf32>
    %cst_14 = arith.constant 5.000000e-01 : f32
    %51 = vector.broadcast %cst_14 : f32 to vector<1x128xf32>
    %52 = arith.mulf %51, %17 : vector<1x128xf32>
    %53 = arith.subf %14, %52 : vector<1x128xf32>
    %54 = arith.minimumf %20, %38 : vector<1x128xf32>
    %55 = arith.maximumf %23, %41 : vector<1x128xf32>
    %56 = arith.subf %54, %55 : vector<1x128xf32>
    %cst_15 = arith.constant 0.000000e+00 : f32
    %57 = vector.broadcast %cst_15 : f32 to vector<1x128xf32>
    %58 = arith.maximumf %56, %57 : vector<1x128xf32>
    %59 = arith.minimumf %26, %44 : vector<1x128xf32>
    %60 = arith.maximumf %29, %47 : vector<1x128xf32>
    %61 = arith.subf %59, %60 : vector<1x128xf32>
    %cst_16 = arith.constant 0.000000e+00 : f32
    %62 = vector.broadcast %cst_16 : f32 to vector<1x128xf32>
    %63 = arith.maximumf %61, %62 : vector<1x128xf32>
    %64 = arith.minimumf %32, %50 : vector<1x128xf32>
    %65 = arith.maximumf %35, %53 : vector<1x128xf32>
    %66 = arith.subf %64, %65 : vector<1x128xf32>
    %cst_17 = arith.constant 0.000000e+00 : f32
    %67 = vector.broadcast %cst_17 : f32 to vector<1x128xf32>
    %68 = arith.maximumf %66, %67 : vector<1x128xf32>
    %69 = arith.mulf %8, %9 : vector<1x128xf32>
    %70 = arith.mulf %69, %10 : vector<1x128xf32>
    %71 = arith.mulf %15, %16 : vector<1x128xf32>
    %72 = arith.mulf %71, %17 : vector<1x128xf32>
    %73 = arith.mulf %58, %63 : vector<1x128xf32>
    %74 = arith.mulf %73, %68 : vector<1x128xf32>
    %75 = arith.addf %72, %70 : vector<1x128xf32>
    %76 = arith.subf %75, %74 : vector<1x128xf32>
    %77 = arith.subf %12, %5 : vector<1x128xf32>
    %78 = arith.mulf %77, %77 : vector<1x128xf32>
    %79 = arith.subf %13, %6 : vector<1x128xf32>
    %80 = arith.mulf %79, %79 : vector<1x128xf32>
    %81 = arith.addf %78, %80 : vector<1x128xf32>
    %82 = arith.subf %14, %7 : vector<1x128xf32>
    %83 = arith.mulf %82, %82 : vector<1x128xf32>
    %84 = arith.addf %81, %83 : vector<1x128xf32>
    %85 = arith.maximumf %20, %38 : vector<1x128xf32>
    %86 = arith.minimumf %23, %41 : vector<1x128xf32>
    %87 = arith.subf %85, %86 : vector<1x128xf32>
    %cst_18 = arith.constant 0.000000e+00 : f32
    %88 = vector.broadcast %cst_18 : f32 to vector<1x128xf32>
    %89 = arith.maximumf %87, %88 : vector<1x128xf32>
    %90 = arith.maximumf %26, %44 : vector<1x128xf32>
    %91 = arith.minimumf %29, %47 : vector<1x128xf32>
    %92 = arith.subf %90, %91 : vector<1x128xf32>
    %cst_19 = arith.constant 0.000000e+00 : f32
    %93 = vector.broadcast %cst_19 : f32 to vector<1x128xf32>
    %94 = arith.maximumf %92, %93 : vector<1x128xf32>
    %95 = arith.maximumf %32, %50 : vector<1x128xf32>
    %96 = arith.minimumf %35, %53 : vector<1x128xf32>
    %97 = arith.subf %95, %96 : vector<1x128xf32>
    %cst_20 = arith.constant 0.000000e+00 : f32
    %98 = vector.broadcast %cst_20 : f32 to vector<1x128xf32>
    %99 = arith.maximumf %97, %98 : vector<1x128xf32>
    %100 = arith.mulf %89, %89 : vector<1x128xf32>
    %101 = arith.mulf %94, %94 : vector<1x128xf32>
    %102 = arith.addf %100, %101 : vector<1x128xf32>
    %103 = arith.mulf %99, %99 : vector<1x128xf32>
    %104 = arith.addf %102, %103 : vector<1x128xf32>
    %105 = arith.divf %74, %76 : vector<1x128xf32>
    %106 = arith.divf %84, %104 : vector<1x128xf32>
    %107 = arith.subf %105, %106 : vector<1x128xf32>
    %cst_21 = arith.constant -1.000000e+00 : f32
    %cst_22 = arith.constant 1.000000e+00 : f32
    %108 = vector.broadcast %cst_21 : f32 to vector<1x128xf32>
    %109 = arith.maximumf %108, %107 : vector<1x128xf32>
    %110 = vector.broadcast %cst_22 : f32 to vector<1x128xf32>
    %111 = arith.minimumf %110, %109 : vector<1x128xf32>
    %cst_23 = arith.constant 0.000000e+00 : f32
    %112 = vector.broadcast %cst_23 : f32 to vector<1x128xf32>
    %113 = arith.cmpf ogt, %11, %112 : vector<1x128xf32>
    %c0_24 = arith.constant 0 : index
    %c0_25 = arith.constant 0 : index
    %114 = vector.load %arg4[%c0_24, %c0_25] : memref<1x128xf32, #tpu.memory_space<vmem>>, vector<1x128xf32>
    %cst_26 = arith.constant 1.000000e+00 : f32
    %115 = vector.broadcast %cst_26 : f32 to vector<1x128xf32>
    %116 = arith.subf %115, %111 : vector<1x128xf32>
    %cst_27 = arith.constant 0.000000e+00 : f32
    %117 = vector.broadcast %cst_27 : f32 to vector<1x128xf32>
    %118 = arith.select %113, %116, %117 : vector<1x128xi1>, vector<1x128xf32>
    %119 = arith.addf %114, %118 : vector<1x128xf32>
    %c0_28 = arith.constant 0 : index
    %c0_29 = arith.constant 0 : index
    %120 = vector.load %arg4[%c0_28, %c0_29] : memref<1x128xf32, #tpu.memory_space<vmem>>, vector<1x128xf32>
    tpu.vector_store %arg4[%c0_28, %c0_29], %119 {strides = array<i32>} : memref<1x128xf32, #tpu.memory_space<vmem>>, vector<1x128xf32>,
    %c0_30 = arith.constant 0 : index
    %c0_31 = arith.constant 0 : index
    %121 = vector.load %arg5[%c0_30, %c0_31] : memref<1x128xf32, #tpu.memory_space<vmem>>, vector<1x128xf32>
    %cst_32 = arith.constant 1.000000e+00 : f32
    %cst_33 = arith.constant 0.000000e+00 : f32
    %122 = vector.broadcast %cst_32 : f32 to vector<1x128xf32>
    %123 = vector.broadcast %cst_33 : f32 to vector<1x128xf32>
    %124 = arith.select %113, %122, %123 : vector<1x128xi1>, vector<1x128xf32>
    %125 = arith.addf %121, %124 : vector<1x128xf32>
    %c0_34 = arith.constant 0 : index
    %c0_35 = arith.constant 0 : index
    %126 = vector.load %arg5[%c0_34, %c0_35] : memref<1x128xf32, #tpu.memory_space<vmem>>, vector<1x128xf32>
    tpu.vector_store %arg5[%c0_34, %c0_35], %125 {strides = array<i32>} : memref<1x128xf32, #tpu.memory_space<vmem>>, vector<1x128xf32>,
    %c0_i32_36 = arith.constant 0 : i32
    %127 = arith.cmpi eq, %arg0, %c0_i32_36 : i32
    %128 = arith.extui %127 : i1 to i32
    %c0_i32_37 = arith.constant 0 : i32
    %129 = arith.cmpi ne, %128, %c0_i32_37 : i32
    scf.if %129 {
      %c0_38 = arith.constant 0 : index
      %c0_39 = arith.constant 0 : index
      %130 = vector.load %arg4[%c0_38, %c0_39] : memref<1x128xf32, #tpu.memory_space<vmem>>, vector<1x128xf32>
      %131 = vector.shape_cast %130 : vector<1x128xf32> to vector<1x1x128xf32>
      %cst_40 = arith.constant dense<0.000000e+00> : vector<1xf32>
      %132 = vector.multi_reduction <add>, %131, %cst_40 [1, 2] : vector<1x1x128xf32> to vector<1xf32>
      %133 = vector.shape_cast %132 : vector<1xf32> to vector<1x1x1xf32>
      %134 = vector.extract %133[0, 0, 0] : f32 from vector<1x1x1xf32>
      %c0_41 = arith.constant 0 : index
      %c0_42 = arith.constant 0 : index
      %135 = vector.load %arg5[%c0_41, %c0_42] : memref<1x128xf32, #tpu.memory_space<vmem>>, vector<1x128xf32>
      %136 = vector.shape_cast %135 : vector<1x128xf32> to vector<1x1x128xf32>
      %cst_43 = arith.constant dense<0.000000e+00> : vector<1xf32>
      %137 = vector.multi_reduction <add>, %136, %cst_43 [1, 2] : vector<1x1x128xf32> to vector<1xf32>
      %138 = vector.shape_cast %137 : vector<1xf32> to vector<1x1x1xf32>
      %139 = vector.extract %138[0, 0, 0] : f32 from vector<1x1x1xf32>
      %140 = tpu.iota {dimensions = array<i32: 1>} : vector<1x128xi32>
      %c0_i32_44 = arith.constant 0 : i32
      %141 = vector.broadcast %c0_i32_44 : i32 to vector<1x128xi32>
      %142 = arith.cmpi eq, %140, %141 : vector<1x128xi32>
      %c1_i32 = arith.constant 1 : i32
      %143 = vector.broadcast %c1_i32 : i32 to vector<1x128xi32>
      %144 = arith.cmpi eq, %140, %143 : vector<1x128xi32>
      %cst_45 = arith.constant 0.000000e+00 : f32
      %145 = vector.broadcast %139 : f32 to vector<1x128xf32>
      %146 = vector.broadcast %cst_45 : f32 to vector<1x128xf32>
      %147 = arith.select %144, %145, %146 : vector<1x128xi1>, vector<1x128xf32>
      %148 = vector.broadcast %134 : f32 to vector<1x128xf32>
      %149 = arith.select %142, %148, %147 : vector<1x128xi1>, vector<1x128xf32>
      %c0_46 = arith.constant 0 : index
      %c0_47 = arith.constant 0 : index
      %150 = vector.load %arg3[%c0_46, %c0_47] : memref<1x128xf32, #tpu.memory_space<vmem>>, vector<1x128xf32>
      tpu.vector_store %arg3[%c0_46, %c0_47], %149 {strides = array<i32>} : memref<1x128xf32, #tpu.memory_space<vmem>>, vector<1x128xf32>,
    } else {
    }
    return
  }
  func.func @transform_0(%arg0: i32) -> (i32, i32) {
    %c0_i32 = arith.constant 0 : i32
    %c0_i32_0 = arith.constant 0 : i32
    return %c0_i32, %arg0 : i32, i32
  }
  func.func @transform_1(%arg0: i32) -> (i32, i32) {
    %c0_i32 = arith.constant 0 : i32
    %c0_i32_0 = arith.constant 0 : i32
    return %c0_i32, %arg0 : i32, i32
  }
  func.func @transform_2(%arg0: i32) -> (i32, i32) {
    %c0_i32 = arith.constant 0 : i32
    %c0_i32_0 = arith.constant 0 : i32
    %c0_i32_1 = arith.constant 0 : i32
    return %c0_i32, %c0_i32_0 : i32, i32
  }
}

</mosaic_0001>

<llo_original>
// kernel: tpu_custom_call.1
$region0: #{tpu_custom_call.1}
  #allocation0 [shape = 'u32[]', space=smem, size = 0x4, offset = 0x4, fixed_abs, tag = 'smem constant byte address 0x4 - core index']
  #allocation1 [shape = 'u32[144,128]{1,0:T(1,128)}', space=vmem, size = 0x12000, scoped, tag = 'internal scratch']
  #allocation2 [shape = 'f32[1,128]{1,0:T(1,128)}', space=vmem, size = 0x200, scoped, tag = 'scratch operand']
  #allocation3 [shape = 'f32[1,128]{1,0:T(1,128)}', space=vmem, size = 0x200, scoped, tag = 'scratch operand']
  %s0 = inlined_call_operand.hbm [shape: f32[8,128], index: 0, kind: input, shape index: {}]
  %s1 = inlined_call_operand.hbm [shape: f32[8,128], index: 1, kind: input, shape index: {}]
  %s2 = inlined_call_operand.hbm [shape: f32[1,128], index: 2, kind: output, shape index: {}]
  %s3 = sld [smem:[#allocation0]]
  $region34: #{tpu_custom_call.1} parent=0
    _
  %s5 = ssub.s32 1, %s3
  %s6 = scalar_select 0, %s5, %s3
  $region1: #{tpu_custom_call.1} parent=0
    #allocation4 [shape = 'u8[4096]{0}', space=vmem, size = 0x1000, scoped, tag = 'input window, operand 0, single buffered']
    #allocation5 [shape = 's32[1]{0}', space=sflag, size = 0x4, scoped, tag = 'scoped memory for tpu_custom_call.1']
    #allocation6 [shape = 's32[1]{0}', space=sflag, size = 0x4, scoped, tag = 'scoped memory for tpu_custom_call.1']
    #allocation7 [shape = 'u8[4096]{0}', space=vmem, size = 0x1000, scoped, tag = 'input window, operand 1, single buffered']
    #allocation8 [shape = 's32[1]{0}', space=sflag, size = 0x4, scoped, tag = 'scoped memory for tpu_custom_call.1']
    #allocation9 [shape = 'u8[512]{0}', space=vmem, size = 0x400, scoped, tag = 'output window, operand 0, single buffered']
    %7 = vsyncpa [#allocation5], 0
    %8 = vsyncpa [#allocation8], 0
    %9 = vsyncpa [#allocation6], 0
    // Predicated region
    $region2: #{tpu_custom_call.1} parent=1 // pred_check
      _
    $region3: #{tpu_custom_call.1} parent=1 // pred_check_branch
      %11 = sbr.rel (0) target = $region5
    $region4: #{tpu_custom_call.1} parent=1 // pred_region
      %s13 = ssub.s32 128, 128
      %14 = vsyncadd [#allocation5], %s13
      %s16 = sshll.u32 [#allocation4], 4
      %s17 = int_to_ptr.vmem [resolvable:$true] %s16
      %19 = dma.hbm_to_vmem [thread:$0]  %s0, 128, %s17, [#allocation5]
    $region5: #{tpu_custom_call.1} parent=1 // pred_fallthru
      _
    // Predicated region
    $region6: #{tpu_custom_call.1} parent=1 // pred_check
      _
    $region7: #{tpu_custom_call.1} parent=1 // pred_check_branch
      %21 = sbr.rel (0) target = $region9
    $region8: #{tpu_custom_call.1} parent=1 // pred_region
      %s23 = ssub.s32 128, 128
      %24 = vsyncadd [#allocation8], %s23
      %s26 = sshll.u32 [#allocation7], 4
      %s27 = int_to_ptr.vmem [resolvable:$true] %s26
      %29 = dma.hbm_to_vmem [thread:$0]  %s1, 128, %s27, [#allocation8]
    $region9: #{tpu_custom_call.1} parent=1 // pred_fallthru
      _
    // Predicated region
    $region10: #{tpu_custom_call.1} parent=1 // pred_check
      _
    $region11: #{tpu_custom_call.1} parent=1 // pred_check_branch
      %31 = sbr.rel (0) target = $region13
    $region12: #{tpu_custom_call.1} parent=1 // pred_region
      %32 = dma.done [#allocation5], 128
    $region13: #{tpu_custom_call.1} parent=1 // pred_fallthru
      _
    // Predicated region
    $region14: #{tpu_custom_call.1} parent=1 // pred_check
      _
    $region15: #{tpu_custom_call.1} parent=1 // pred_check_branch
      %34 = sbr.rel (0) target = $region17
    $region16: #{tpu_custom_call.1} parent=1 // pred_region
      %35 = dma.done [#allocation8], 128
    $region17: #{tpu_custom_call.1} parent=1 // pred_fallthru
      _
    %p36 = scmp.eq.s32.totalorder 0, 0
    // Predicated region
    $region18: #{tpu_custom_call.1} parent=1 // pred_check
      %p37 = pneg %p36
    $region19: #{tpu_custom_call.1} parent=1 // pred_check_branch
      %39 = sbr.rel (%p37) target = $region21
    $region20: #{tpu_custom_call.1} parent=1 // pred_region
      %40 = vst [vmem:[#allocation2] sm:$0x1] 0.0
      %41 = vst [vmem:[#allocation3] sm:$0x1] 0.0
    $region21: #{tpu_custom_call.1} parent=1 // pred_fallthru
      _
    %v42 = vld [vmem:[#allocation4] sm:$0xff]
    %v43 = vld [vmem:[#allocation7] sm:$0xff]
    %v44 = vmul.f32 %v42, 0.5
    %v46 = vrot.slane %v44, 3
    %v48 = vadd.f32 %v42, %v46
    %v49 = vsub.f32 %v42, %v46
    %v50 = vmul.f32 %v43, 0.5
    %v52 = vrot.slane %v50, 3
    %v54 = vadd.f32 %v43, %v52
    %v55 = vsub.f32 %v43, %v52
    %v56 = vmin.f32 %v48, %v54
    %v57 = vmax.f32 %v49, %v55
    %v58 = vsub.f32 %v56, %v57
    %v59 = vmax.f32 %v58, 0.0
    %v61 = vrot.slane %v42, 1
    %v63 = vmul.f32 %v42, %v61
    %v64 = vrot.slane %v42, 2
    %v66 = vmul.f32 %v63, %v64
    %v68 = vrot.slane %v43, 1
    %v70 = vmul.f32 %v43, %v68
    %v71 = vrot.slane %v43, 2
    %v73 = vmul.f32 %v70, %v71
    %v75 = vrot.slane %v59, 1
    %v77 = vmul.f32 %v59, %v75
    %v78 = vrot.slane %v59, 2
    %v80 = vmul.f32 %v77, %v78
    %v81 = vadd.f32 %v73, %v66
    %v83 = vrot.slane %v80, 5
    %v85 = vsub.f32 %v81, %v83
    %v86 = vsub.f32 %v43, %v42
    %v87 = vmul.f32 %v86, %v86
    %v89 = vrot.slane %v87, 1
    %v91 = vadd.f32 %v87, %v89
    %v92 = vrot.slane %v87, 2
    %v94 = vadd.f32 %v91, %v92
    %v95 = vmax.f32 %v48, %v54
    %v96 = vmin.f32 %v49, %v55
    %v97 = vsub.f32 %v95, %v96
    %v98 = vmax.f32 %v97, 0.0
    %v99 = vmul.f32 %v98, %v98
    %v101 = vrot.slane %v99, 1
    %v103 = vadd.f32 %v99, %v101
    %v104 = vrot.slane %v99, 2
    %v106 = vadd.f32 %v103, %v104
    %v108 = vrot.slane %v85, 3
    %v110 = vrcp.pop %v108
    %v111 = vmul.f32 %v80, %v110
    %v112 = vrcp.pop %v106
    %v113 = vmul.f32 %v94, %v112
    %v114 = vsub.f32 %v111, %v113
    %v115 = vmax.f32 %v114, -1.0
    %v116 = vmin.f32 %v115, 1.0
    %vm117 = vcmp.gt.f32.partialorder %v42, 0.0
    %v118 = vld [vmem:[#allocation2] sm:$0x1]
    %v119 = vsub.f32 1.0, %v116
    %v121 = vrot.slane %v119, 2
    %v123 = vsel %vm117, %v121, 0.0
    %v125 = vcombine.high %v123, %v123
    %v127 = vunpack.c.l.s4 1966171168
    %v128 = vunpack.c.0.s8 %v127
    %v129 = vlaneseq
    %v130 = vshrl.u32 %v129, 7
    %v131 = vsub.s32 %v128, %v130
    %v132 = vrot.slane %v125, %v131
    %v134 = vunpack.c.l.s4 1966171168
    %v135 = vunpack.c.0.s8 %v134
    %v136 = vlaneseq
    %v137 = vshrl.u32 %v136, 7
    %v138 = vsub.s32 %v135, %v137
    %v139 = vrot.slane %v132, %v138
    %v140 = vcombine.high %v139, %v139
    %v142 = vadd.f32 %v118, %v140
    %143 = vst [vmem:[#allocation2] sm:$0x1] %v142
    %v144 = vld [vmem:[#allocation3] sm:$0x1]
    %v145 = vsel %vm117, 1.0, 0.0
    %v147 = vcombine.high %v145, %v145
    %v149 = vunpack.c.l.s4 1966171168
    %v150 = vunpack.c.0.s8 %v149
    %v151 = vlaneseq
    %v152 = vshrl.u32 %v151, 7
    %v153 = vsub.s32 %v150, %v152
    %v154 = vrot.slane %v147, %v153
    %v156 = vunpack.c.l.s4 1966171168
    %v157 = vunpack.c.0.s8 %v156
    %v158 = vlaneseq
    %v159 = vshrl.u32 %v158, 7
    %v160 = vsub.s32 %v157, %v159
    %v161 = vrot.slane %v154, %v160
    %v162 = vcombine.high %v161, %v161
    %v164 = vadd.f32 %v144, %v162
    %165 = vst [vmem:[#allocation3] sm:$0x1] %v164
    // Predicated region
    $region22: #{tpu_custom_call.1} parent=1 // pred_check
      %p166 = pneg %p36
    $region23: #{tpu_custom_call.1} parent=1 // pred_check_branch
      %168 = sbr.rel (%p166) target = $region25
    $region24: #{tpu_custom_call.1} parent=1 // pred_region
      %v169 = vld [vmem:[#allocation2] sm:$0x1]
      %vm170 = vcmask 1040384
      %v171 = vsel %vm170, %v169, 0.0
      %172 = vadd.xlane.f32.xlu0 %v171
      %v173 = vpop.xlane.xlu0 %172
      %v174 = vrot.slane %v173, 4
      %v175 = vadd.f32 %v173, %v174
      %v176 = vrot.slane %v175, 2
      %v177 = vadd.f32 %v175, %v176
      %v178 = vrot.slane %v177, 1
      %v179 = vadd.f32 %v177, %v178
      %s180 = vtos %v179
      %v181 = vld [vmem:[#allocation3] sm:$0x1]
      %v182 = vsel %vm170, %v181, 0.0
      %183 = vadd.xlane.f32.xlu0 %v182
      %v184 = vpop.xlane.xlu0 %183
      %v185 = vrot.slane %v184, 4
      %v186 = vadd.f32 %v184, %v185
      %v187 = vrot.slane %v186, 2
      %v188 = vadd.f32 %v186, %v187
      %v189 = vrot.slane %v188, 1
      %v190 = vadd.f32 %v188, %v189
      %s191 = vtos %v190
      %v192 = vlaneseq
      %v193 = vand.u32 %v192, 127
      %vm194 = vcmp.eq.s32.totalorder %v193, 0
      %vm195 = vcmp.eq.s32.totalorder %v193, 1
      %v196 = vstv %s191
      %v197 = vsel %vm195, %v196, 0.0
      %v198 = vstv %s180
      %v199 = vsel %vm194, %v198, %v197
      %200 = vst [vmem:[#allocation9] sm:$0x1] %v199
    $region25: #{tpu_custom_call.1} parent=1 // pred_fallthru
      _
    // Predicated region
    $region26: #{tpu_custom_call.1} parent=1 // pred_check
      _
    $region27: #{tpu_custom_call.1} parent=1 // pred_check_branch
      %202 = sbr.rel (0) target = $region29
    $region28: #{tpu_custom_call.1} parent=1 // pred_region
      %s204 = ssub.s32 16, 16
      %205 = vsyncadd [#allocation6], %s204
      %s207 = sshll.u32 [#allocation9], 4
      %s208 = int_to_ptr.vmem [resolvable:$true] %s207
      %210 = dma.vmem_to_hbm [thread:$0]  %s208, 16, %s2, [#allocation6]
    $region29: #{tpu_custom_call.1} parent=1 // pred_fallthru
      _
    // Predicated region
    $region30: #{tpu_custom_call.1} parent=1 // pred_check
      _
    $region31: #{tpu_custom_call.1} parent=1 // pred_check_branch
      %212 = sbr.rel (0) target = $region33
    $region32: #{tpu_custom_call.1} parent=1 // pred_region
      %213 = dma.done [#allocation6], 16
    $region33: #{tpu_custom_call.1} parent=1 // pred_fallthru
      _
    %214 = vsyncpa [#allocation5], 1
    %215 = vsyncpa [#allocation8], 1
    %216 = vsyncpa [#allocation6], 1

</llo_original>
